<compile_context>
chip_gen: v7x
topology: tpu7x:2x2x1
jax: 0.10.0
libtpu: 0.0.40
codegen_flags: <defaults>
</compile_context>

<pallas_src>
import functools

import numpy as np

import jax
import jax.numpy as jnp
from jax.experimental import pallas as pl
from jax.experimental.pallas import tpu as pltpu


def _bn_relu_conv3x3_cat_kernel(x_ref, ss_ref, w_ref, mask_ref, o_ref, *, H, W):
    """Fused BN(folded) -> ReLU -> 3x3 conv (pad=1, no bias) -> channel concat.

    x_ref:    (NB, C, H*W)   NB images; channels in sublanes, spatial in lanes
    ss_ref:   (C, 2)         packed [scale, shift]; scale = gamma/sqrt(var+eps)
    w_ref:    (G, 9*C)       conv weight, tap-major ((ky,kx) outer, c inner)
    mask_ref: (9, H*W)       {0,1} boundary mask per (dy,dx) tap (precomputed)
    o_ref:    (NB, C+G, H*W) rows [0,C) = x, rows [C,C+G) = conv output
    """
    nb, C, HW = x_ref.shape
    G = w_ref.shape[0]

    ss = ss_ref[...]
    scale = ss[:, 0:1]                                        # (C, 1)
    shift = ss[:, 1:2]                                        # (C, 1)
    mask = mask_ref[...]                                      # (9, HW)

    xs = []
    cols = []
    for i in range(nb):
        x_i = x_ref[i]                                        # (C, HW) f32
        xs.append(x_i)
        # BN (folded scale/shift) + ReLU in f32 on the VPU.
        a = jnp.maximum(x_i * scale + shift, 0.0)

        # im2col: each tap (dy, dx) is a lane-roll of `a` (XLU) with the
        # out-of-image positions zeroed by the precomputed mask row.
        taps = []
        t = 0
        for dy in (-1, 0, 1):
            for dx in (-1, 0, 1):
                s = dy * W + dx
                tap = a if s == 0 else pltpu.roll(a, shift=(-s) % HW, axis=1)
                taps.append(tap * mask[t:t + 1, :])
                t += 1
        cols.append(jnp.concatenate(taps, axis=0))            # (9C, HW)

    # Lane-concat the per-image im2col tiles (tile-aligned at multiples of HW)
    # so the whole step is ONE MXU matmul with NB*HW output lanes.
    col = cols[0] if nb == 1 else jnp.concatenate(cols, axis=1)   # (9C, nb*HW)

    # TODO(synk): for real DenseNet C (hundreds), split this into 3 (K=3C) or
    # 9 (K=C) accumulated matmuls instead of materializing the full col.
    conv = jnp.dot(w_ref[...], col.astype(w_ref.dtype),
                   preferred_element_type=jnp.float32)        # (G, nb*HW)

    # Fused concat([x, conv], channel axis) via two direct stores per image
    # (no in-register sublane relayout of the conv tile).
    for i in range(nb):
        o_ref[i, pl.ds(0, C), :] = xs[i].astype(o_ref.dtype)
        o_ref[i, pl.ds(C, G), :] = conv[:, i * HW:(i + 1) * HW].astype(o_ref.dtype)


def _pick_images_per_step(N, nb_max=8):
    # Amortize per-grid-step fixed cost over several images, but keep >= 2
    # "parallel" grid steps once N >= 4 so both v7x TensorCores get work.
    limit = min(nb_max, N if N < 4 else max(1, N // 2))
    for d in range(limit, 0, -1):
        if N % d == 0:
            return d
    return 1


@functools.partial(jax.jit, static_argnames=("eps", "use_bf16_matmul"))
def single_layer_forward(x_nchw, gamma, beta, weight, eps=1e-5,
                         use_bf16_matmul=False):
    """x_nchw: (N, C, H, W) f32; weight: (G, C, 3, 3) f32 (PyTorch OIHW).

    Returns (N, C + G, H, W), matching torch.cat((x, conv(relu(bn(x)))), 1).
    """
    N, C, H, W = x_nchw.shape
    G = weight.shape[0]
    HW = H * W

    # Free reshape: NCHW -> (N, C, H*W); no transposes anywhere in the wrapper.
    x = x_nchw.astype(jnp.float32).reshape(N, C, HW)

    # BatchNorm train-mode batch statistics (biased variance), centered
    # two-pass form to match PyTorch numerics (avoids E[x^2]-E[x]^2
    # cancellation flagged in review).
    # TODO(synk): at real DenseNet sizes, fold this into a single-HBM-pass
    # (sum, sumsq)/Welford prologue Pallas kernel so x is only read once.
    m1 = jnp.mean(x, axis=(0, 2))
    var = jnp.mean(jnp.square(x - m1[None, :, None]), axis=(0, 2))
    scale = gamma.astype(jnp.float32) / jnp.sqrt(var + eps)
    shift = beta.astype(jnp.float32) - m1 * scale
    ss = jnp.stack([scale, shift], axis=1)                    # (C, 2) — one operand

    # OIHW -> (G, 9C), tap-major, matching the im2col row order in the kernel.
    matmul_dtype = jnp.bfloat16 if use_bf16_matmul else jnp.float32
    w2 = jnp.transpose(weight, (0, 2, 3, 1)).reshape(G, 9 * C).astype(matmul_dtype)

    # Grid-invariant im2col boundary masks, hoisted out of the kernel body.
    h_idx = np.arange(H).reshape(H, 1)
    w_idx = np.arange(W).reshape(1, W)
    rows = []
    for dy in (-1, 0, 1):
        for dx in (-1, 0, 1):
            valid = ((h_idx + dy >= 0) & (h_idx + dy < H) &
                     (w_idx + dx >= 0) & (w_idx + dx < W))
            rows.append(valid.reshape(-1))
    mask = jnp.asarray(np.stack(rows, axis=0), dtype=jnp.float32)   # (9, HW)

    nb = _pick_images_per_step(N)

    # NOTE: for real DenseNet sizes (large C/H/W) tile H with a 1-row halo and
    # keep per-input blocks <= ~8-12 MiB so double-buffering fits v7x's 32 MiB
    # default scoped VMEM (64 MiB physical); at these sizes no override needed.
    out = pl.pallas_call(
        functools.partial(_bn_relu_conv3x3_cat_kernel, H=H, W=W),
        out_shape=jax.ShapeDtypeStruct((N, C + G, HW), jnp.float32),
        grid=(N // nb,),
        in_specs=[
            pl.BlockSpec((nb, C, HW), lambda n: (n, 0, 0)),
            pl.BlockSpec((C, 2), lambda n: (0, 0)),
            pl.BlockSpec((G, 9 * C), lambda n: (0, 0)),
            pl.BlockSpec((9, HW), lambda n: (0, 0)),
        ],
        out_specs=pl.BlockSpec((nb, C + G, HW), lambda n: (n, 0, 0)),
        compiler_params=pltpu.CompilerParams(
            dimension_semantics=("parallel",)),
    )(x, ss, w2, mask)

    # Free reshape back to NCHW; the concat already happened inside the kernel.
    return out.reshape(N, C + G, H, W)


if __name__ == "__main__":
    # Small shapes consistent with SingleLayer(nChannels=4, growthRate=8).
    N, C, H, W, G = 2, 4, 16, 16, 8
    key = jax.random.PRNGKey(0)
    kx, kg, kb, kw = jax.random.split(key, 4)

    x = jax.random.normal(kx, (N, C, H, W), dtype=jnp.float32)
    gamma = jax.random.uniform(kg, (C,), jnp.float32, 0.5, 1.5)
    beta = 0.1 * jax.random.normal(kb, (C,), dtype=jnp.float32)
    weight = jax.random.normal(kw, (G, C, 3, 3), dtype=jnp.float32) * (
        2.0 / (C * 9)) ** 0.5

    out = single_layer_forward(x, gamma, beta, weight)
    out = jax.block_until_ready(out)
    assert out.shape == (N, C + G, H, W), out.shape

    # Pure-JAX reference (BN train-mode -> ReLU -> conv(pad=1) -> concat).
    eps = 1e-5
    mean = jnp.mean(x, axis=(0, 2, 3))
    var = jnp.mean(jnp.square(x - mean[None, :, None, None]), axis=(0, 2, 3))
    a = jnp.maximum(
        (x - mean[None, :, None, None]) / jnp.sqrt(var + eps)[None, :, None, None]
        * gamma[None, :, None, None] + beta[None, :, None, None], 0.0)
    conv_ref = jax.lax.conv_general_dilated(
        a, weight, window_strides=(1, 1), padding="SAME",
        dimension_numbers=("NCHW", "OIHW", "NCHW"))
    expected = jnp.concatenate([x, conv_ref], axis=1)
    assert jnp.allclose(out, expected, atol=2e-4, rtol=2e-4), (
        float(jnp.max(jnp.abs(out - expected))))

    print("KERNEL_OK")
</pallas_src>

<mosaic_0001>
module attributes {stable_mosaic.version = 11 : i64} {
  func.func @_bn_relu_conv3x3_cat_kernel(%arg0: i32, %arg1: memref<2x4x256xf32, #tpu.memory_space<vmem>>, %arg2: memref<4x2xf32, #tpu.memory_space<vmem>>, %arg3: memref<8x36xf32, #tpu.memory_space<vmem>>, %arg4: memref<9x256xf32, #tpu.memory_space<vmem>>, %arg5: memref<2x12x256xf32, #tpu.memory_space<vmem>>) attributes {dimension_semantics = [#tpu.dimension_semantics<parallel>], iteration_bounds = array<i64: 1>, scalar_prefetch = 0 : i64, scratch_operands = 0 : i64, tpu.core_type = #tpu.core_type<tc>, window_params = [{transform_indices = @transform_0, window_bounds = array<i64: 2, 4, 256>}, {pipeline_mode = #tpu.pipeline_mode<synchronous>, transform_indices = @transform_1, window_bounds = array<i64: 4, 2>}, {pipeline_mode = #tpu.pipeline_mode<synchronous>, transform_indices = @transform_2, window_bounds = array<i64: 8, 36>}, {pipeline_mode = #tpu.pipeline_mode<synchronous>, transform_indices = @transform_3, window_bounds = array<i64: 9, 256>}, {transform_indices = @transform_4, window_bounds = array<i64: 2, 12, 256>}]} {
    %c0 = arith.constant 0 : index
    %c0_0 = arith.constant 0 : index
    %0 = vector.load %arg2[%c0, %c0_0] : memref<4x2xf32, #tpu.memory_space<vmem>>, vector<4x2xf32>
    %1 = vector.extract_strided_slice %0 {offsets = [0, 0], sizes = [4, 1], strides = [1, 1]} : vector<4x2xf32> to vector<4x1xf32>
    %2 = vector.extract_strided_slice %0 {offsets = [0, 1], sizes = [4, 1], strides = [1, 1]} : vector<4x2xf32> to vector<4x1xf32>
    %c0_1 = arith.constant 0 : index
    %c0_2 = arith.constant 0 : index
    %3 = vector.load %arg4[%c0_1, %c0_2] : memref<9x256xf32, #tpu.memory_space<vmem>>, vector<9x256xf32>
    %c0_3 = arith.constant 0 : index
    %c0_4 = arith.constant 0 : index
    %c0_5 = arith.constant 0 : index
    %4 = vector.load %arg1[%c0_3, %c0_4, %c0_5] : memref<2x4x256xf32, #tpu.memory_space<vmem>>, vector<1x4x256xf32>
    %5 = vector.shape_cast %4 : vector<1x4x256xf32> to vector<4x256xf32>
    %6 = vector.broadcast %1 : vector<4x1xf32> to vector<4x256xf32>
    %7 = arith.mulf %5, %6 : vector<4x256xf32>
    %8 = vector.broadcast %2 : vector<4x1xf32> to vector<4x256xf32>
    %9 = arith.addf %7, %8 : vector<4x256xf32>
    %cst = arith.constant 0.000000e+00 : f32
    %10 = vector.broadcast %cst : f32 to vector<4x256xf32>
    %11 = arith.maximumf %9, %10 : vector<4x256xf32>
    %c17_i32 = arith.constant 17 : i32
    %12 = tpu.dynamic_rotate %11 by %c17_i32 dim 1 : vector<4x256xf32>, i32 -> vector<4x256xf32>
    %13 = vector.extract_strided_slice %3 {offsets = [0, 0], sizes = [1, 256], strides = [1, 1]} : vector<9x256xf32> to vector<1x256xf32>
    %14 = vector.broadcast %13 : vector<1x256xf32> to vector<4x256xf32>
    %15 = arith.mulf %12, %14 : vector<4x256xf32>
    %c16_i32 = arith.constant 16 : i32
    %16 = tpu.dynamic_rotate %11 by %c16_i32 dim 1 : vector<4x256xf32>, i32 -> vector<4x256xf32>
    %17 = vector.extract_strided_slice %3 {offsets = [1, 0], sizes = [1, 256], strides = [1, 1]} : vector<9x256xf32> to vector<1x256xf32>
    %18 = vector.broadcast %17 : vector<1x256xf32> to vector<4x256xf32>
    %19 = arith.mulf %16, %18 : vector<4x256xf32>
    %c15_i32 = arith.constant 15 : i32
    %20 = tpu.dynamic_rotate %11 by %c15_i32 dim 1 : vector<4x256xf32>, i32 -> vector<4x256xf32>
    %21 = vector.extract_strided_slice %3 {offsets = [2, 0], sizes = [1, 256], strides = [1, 1]} : vector<9x256xf32> to vector<1x256xf32>
    %22 = vector.broadcast %21 : vector<1x256xf32> to vector<4x256xf32>
    %23 = arith.mulf %20, %22 : vector<4x256xf32>
    %c1_i32 = arith.constant 1 : i32
    %24 = tpu.dynamic_rotate %11 by %c1_i32 dim 1 : vector<4x256xf32>, i32 -> vector<4x256xf32>
    %25 = vector.extract_strided_slice %3 {offsets = [3, 0], sizes = [1, 256], strides = [1, 1]} : vector<9x256xf32> to vector<1x256xf32>
    %26 = vector.broadcast %25 : vector<1x256xf32> to vector<4x256xf32>
    %27 = arith.mulf %24, %26 : vector<4x256xf32>
    %28 = vector.extract_strided_slice %3 {offsets = [4, 0], sizes = [1, 256], strides = [1, 1]} : vector<9x256xf32> to vector<1x256xf32>
    %29 = vector.broadcast %28 : vector<1x256xf32> to vector<4x256xf32>
    %30 = arith.mulf %11, %29 : vector<4x256xf32>
    %c255_i32 = arith.constant 255 : i32
    %31 = tpu.dynamic_rotate %11 by %c255_i32 dim 1 : vector<4x256xf32>, i32 -> vector<4x256xf32>
    %32 = vector.extract_strided_slice %3 {offsets = [5, 0], sizes = [1, 256], strides = [1, 1]} : vector<9x256xf32> to vector<1x256xf32>
    %33 = vector.broadcast %32 : vector<1x256xf32> to vector<4x256xf32>
    %34 = arith.mulf %31, %33 : vector<4x256xf32>
    %c241_i32 = arith.constant 241 : i32
    %35 = tpu.dynamic_rotate %11 by %c241_i32 dim 1 : vector<4x256xf32>, i32 -> vector<4x256xf32>
    %36 = vector.extract_strided_slice %3 {offsets = [6, 0], sizes = [1, 256], strides = [1, 1]} : vector<9x256xf32> to vector<1x256xf32>
    %37 = vector.broadcast %36 : vector<1x256xf32> to vector<4x256xf32>
    %38 = arith.mulf %35, %37 : vector<4x256xf32>
    %c240_i32 = arith.constant 240 : i32
    %39 = tpu.dynamic_rotate %11 by %c240_i32 dim 1 : vector<4x256xf32>, i32 -> vector<4x256xf32>
    %40 = vector.extract_strided_slice %3 {offsets = [7, 0], sizes = [1, 256], strides = [1, 1]} : vector<9x256xf32> to vector<1x256xf32>
    %41 = vector.broadcast %40 : vector<1x256xf32> to vector<4x256xf32>
    %42 = arith.mulf %39, %41 : vector<4x256xf32>
    %c239_i32 = arith.constant 239 : i32
    %43 = tpu.dynamic_rotate %11 by %c239_i32 dim 1 : vector<4x256xf32>, i32 -> vector<4x256xf32>
    %44 = vector.extract_strided_slice %3 {offsets = [8, 0], sizes = [1, 256], strides = [1, 1]} : vector<9x256xf32> to vector<1x256xf32>
    %45 = vector.broadcast %44 : vector<1x256xf32> to vector<4x256xf32>
    %46 = arith.mulf %43, %45 : vector<4x256xf32>
    %47 = tpu.concatenate %15, %19, %23, %27, %30, %34, %38, %42, %46 in 0 : vector<4x256xf32>, vector<4x256xf32>, vector<4x256xf32>, vector<4x256xf32>, vector<4x256xf32>, vector<4x256xf32>, vector<4x256xf32>, vector<4x256xf32>, vector<4x256xf32> -> vector<36x256xf32>
    %c1 = arith.constant 1 : index
    %c0_6 = arith.constant 0 : index
    %c0_7 = arith.constant 0 : index
    %48 = vector.load %arg1[%c1, %c0_6, %c0_7] : memref<2x4x256xf32, #tpu.memory_space<vmem>>, vector<1x4x256xf32>
    %49 = vector.shape_cast %48 : vector<1x4x256xf32> to vector<4x256xf32>
    %50 = vector.broadcast %1 : vector<4x1xf32> to vector<4x256xf32>
    %51 = arith.mulf %49, %50 : vector<4x256xf32>
    %52 = vector.broadcast %2 : vector<4x1xf32> to vector<4x256xf32>
    %53 = arith.addf %51, %52 : vector<4x256xf32>
    %cst_8 = arith.constant 0.000000e+00 : f32
    %54 = vector.broadcast %cst_8 : f32 to vector<4x256xf32>
    %55 = arith.maximumf %53, %54 : vector<4x256xf32>
    %c17_i32_9 = arith.constant 17 : i32
    %56 = tpu.dynamic_rotate %55 by %c17_i32_9 dim 1 : vector<4x256xf32>, i32 -> vector<4x256xf32>
    %57 = vector.extract_strided_slice %3 {offsets = [0, 0], sizes = [1, 256], strides = [1, 1]} : vector<9x256xf32> to vector<1x256xf32>
    %58 = vector.broadcast %57 : vector<1x256xf32> to vector<4x256xf32>
    %59 = arith.mulf %56, %58 : vector<4x256xf32>
    %c16_i32_10 = arith.constant 16 : i32
    %60 = tpu.dynamic_rotate %55 by %c16_i32_10 dim 1 : vector<4x256xf32>, i32 -> vector<4x256xf32>
    %61 = vector.extract_strided_slice %3 {offsets = [1, 0], sizes = [1, 256], strides = [1, 1]} : vector<9x256xf32> to vector<1x256xf32>
    %62 = vector.broadcast %61 : vector<1x256xf32> to vector<4x256xf32>
    %63 = arith.mulf %60, %62 : vector<4x256xf32>
    %c15_i32_11 = arith.constant 15 : i32
    %64 = tpu.dynamic_rotate %55 by %c15_i32_11 dim 1 : vector<4x256xf32>, i32 -> vector<4x256xf32>
    %65 = vector.extract_strided_slice %3 {offsets = [2, 0], sizes = [1, 256], strides = [1, 1]} : vector<9x256xf32> to vector<1x256xf32>
    %66 = vector.broadcast %65 : vector<1x256xf32> to vector<4x256xf32>
    %67 = arith.mulf %64, %66 : vector<4x256xf32>
    %c1_i32_12 = arith.constant 1 : i32
    %68 = tpu.dynamic_rotate %55 by %c1_i32_12 dim 1 : vector<4x256xf32>, i32 -> vector<4x256xf32>
    %69 = vector.extract_strided_slice %3 {offsets = [3, 0], sizes = [1, 256], strides = [1, 1]} : vector<9x256xf32> to vector<1x256xf32>
    %70 = vector.broadcast %69 : vector<1x256xf32> to vector<4x256xf32>
    %71 = arith.mulf %68, %70 : vector<4x256xf32>
    %72 = vector.extract_strided_slice %3 {offsets = [4, 0], sizes = [1, 256], strides = [1, 1]} : vector<9x256xf32> to vector<1x256xf32>
    %73 = vector.broadcast %72 : vector<1x256xf32> to vector<4x256xf32>
    %74 = arith.mulf %55, %73 : vector<4x256xf32>
    %c255_i32_13 = arith.constant 255 : i32
    %75 = tpu.dynamic_rotate %55 by %c255_i32_13 dim 1 : vector<4x256xf32>, i32 -> vector<4x256xf32>
    %76 = vector.extract_strided_slice %3 {offsets = [5, 0], sizes = [1, 256], strides = [1, 1]} : vector<9x256xf32> to vector<1x256xf32>
    %77 = vector.broadcast %76 : vector<1x256xf32> to vector<4x256xf32>
    %78 = arith.mulf %75, %77 : vector<4x256xf32>
    %c241_i32_14 = arith.constant 241 : i32
    %79 = tpu.dynamic_rotate %55 by %c241_i32_14 dim 1 : vector<4x256xf32>, i32 -> vector<4x256xf32>
    %80 = vector.extract_strided_slice %3 {offsets = [6, 0], sizes = [1, 256], strides = [1, 1]} : vector<9x256xf32> to vector<1x256xf32>
    %81 = vector.broadcast %80 : vector<1x256xf32> to vector<4x256xf32>
    %82 = arith.mulf %79, %81 : vector<4x256xf32>
    %c240_i32_15 = arith.constant 240 : i32
    %83 = tpu.dynamic_rotate %55 by %c240_i32_15 dim 1 : vector<4x256xf32>, i32 -> vector<4x256xf32>
    %84 = vector.extract_strided_slice %3 {offsets = [7, 0], sizes = [1, 256], strides = [1, 1]} : vector<9x256xf32> to vector<1x256xf32>
    %85 = vector.broadcast %84 : vector<1x256xf32> to vector<4x256xf32>
    %86 = arith.mulf %83, %85 : vector<4x256xf32>
    %c239_i32_16 = arith.constant 239 : i32
    %87 = tpu.dynamic_rotate %55 by %c239_i32_16 dim 1 : vector<4x256xf32>, i32 -> vector<4x256xf32>
    %88 = vector.extract_strided_slice %3 {offsets = [8, 0], sizes = [1, 256], strides = [1, 1]} : vector<9x256xf32> to vector<1x256xf32>
    %89 = vector.broadcast %88 : vector<1x256xf32> to vector<4x256xf32>
    %90 = arith.mulf %87, %89 : vector<4x256xf32>
    %91 = tpu.concatenate %59, %63, %67, %71, %74, %78, %82, %86, %90 in 0 : vector<4x256xf32>, vector<4x256xf32>, vector<4x256xf32>, vector<4x256xf32>, vector<4x256xf32>, vector<4x256xf32>, vector<4x256xf32>, vector<4x256xf32>, vector<4x256xf32> -> vector<36x256xf32>
    %92 = tpu.concatenate %47, %91 in 1 : vector<36x256xf32>, vector<36x256xf32> -> vector<36x512xf32>
    %c0_17 = arith.constant 0 : index
    %c0_18 = arith.constant 0 : index
    %93 = vector.load %arg3[%c0_17, %c0_18] : memref<8x36xf32, #tpu.memory_space<vmem>>, vector<8x36xf32>
    %cst_19 = arith.constant dense<0.000000e+00> : vector<8x512xf32>
    %94 = tpu.matmul %93, %92, %cst_19 {dimension_numbers = #tpu.dot_dimension_numbers<[1], [0], [0], [1], [0, 0, 1, 1], [], []>} : vector<8x36xf32>, vector<36x512xf32>, vector<8x512xf32> -> vector<8x512xf32>
    %c0_20 = arith.constant 0 : index
    %c0_21 = arith.constant 0 : index
    %c0_22 = arith.constant 0 : index
    %95 = vector.load %arg5[%c0_20, %c0_21, %c0_22] : memref<2x12x256xf32, #tpu.memory_space<vmem>>, vector<1x4x256xf32>
    %96 = vector.shape_cast %95 : vector<1x4x256xf32> to vector<4x256xf32>
    %97 = vector.shape_cast %5 : vector<4x256xf32> to vector<1x4x256xf32>
    tpu.vector_store %arg5[%c0_20, %c0_21, %c0_22], %97 {strides = array<i32>} : memref<2x12x256xf32, #tpu.memory_space<vmem>>, vector<1x4x256xf32>,
    %98 = vector.extract_strided_slice %94 {offsets = [0, 0], sizes = [8, 256], strides = [1, 1]} : vector<8x512xf32> to vector<8x256xf32>
    %c0_23 = arith.constant 0 : index
    %c4 = arith.constant 4 : index
    %c0_24 = arith.constant 0 : index
    %99 = vector.load %arg5[%c0_23, %c4, %c0_24] : memref<2x12x256xf32, #tpu.memory_space<vmem>>, vector<1x8x256xf32>
    %100 = vector.shape_cast %99 : vector<1x8x256xf32> to vector<8x256xf32>
    %101 = vector.shape_cast %98 : vector<8x256xf32> to vector<1x8x256xf32>
    tpu.vector_store %arg5[%c0_23, %c4, %c0_24], %101 {strides = array<i32>} : memref<2x12x256xf32, #tpu.memory_space<vmem>>, vector<1x8x256xf32>,
    %c1_25 = arith.constant 1 : index
    %c0_26 = arith.constant 0 : index
    %c0_27 = arith.constant 0 : index
    %102 = vector.load %arg5[%c1_25, %c0_26, %c0_27] : memref<2x12x256xf32, #tpu.memory_space<vmem>>, vector<1x4x256xf32>
    %103 = vector.shape_cast %102 : vector<1x4x256xf32> to vector<4x256xf32>
    %104 = vector.shape_cast %49 : vector<4x256xf32> to vector<1x4x256xf32>
    tpu.vector_store %arg5[%c1_25, %c0_26, %c0_27], %104 {strides = array<i32>} : memref<2x12x256xf32, #tpu.memory_space<vmem>>, vector<1x4x256xf32>,
    %105 = vector.extract_strided_slice %94 {offsets = [0, 256], sizes = [8, 256], strides = [1, 1]} : vector<8x512xf32> to vector<8x256xf32>
    %c1_28 = arith.constant 1 : index
    %c4_29 = arith.constant 4 : index
    %c0_30 = arith.constant 0 : index
    %106 = vector.load %arg5[%c1_28, %c4_29, %c0_30] : memref<2x12x256xf32, #tpu.memory_space<vmem>>, vector<1x8x256xf32>
    %107 = vector.shape_cast %106 : vector<1x8x256xf32> to vector<8x256xf32>
    %108 = vector.shape_cast %105 : vector<8x256xf32> to vector<1x8x256xf32>
    tpu.vector_store %arg5[%c1_28, %c4_29, %c0_30], %108 {strides = array<i32>} : memref<2x12x256xf32, #tpu.memory_space<vmem>>, vector<1x8x256xf32>,
    return
  }
  func.func @transform_0(%arg0: i32) -> (i32, i32, i32) {
    %c0_i32 = arith.constant 0 : i32
    %c0_i32_0 = arith.constant 0 : i32
    %c0_i32_1 = arith.constant 0 : i32
    return %arg0, %c0_i32, %c0_i32_0 : i32, i32, i32
  }
  func.func @transform_1(%arg0: i32) -> (i32, i32) {
    %c0_i32 = arith.constant 0 : i32
    %c0_i32_0 = arith.constant 0 : i32
    %c0_i32_1 = arith.constant 0 : i32
    return %c0_i32, %c0_i32_0 : i32, i32
  }
  func.func @transform_2(%arg0: i32) -> (i32, i32) {
    %c0_i32 = arith.constant 0 : i32
    %c0_i32_0 = arith.constant 0 : i32
    %c0_i32_1 = arith.constant 0 : i32
    return %c0_i32, %c0_i32_0 : i32, i32
  }
  func.func @transform_3(%arg0: i32) -> (i32, i32) {
    %c0_i32 = arith.constant 0 : i32
    %c0_i32_0 = arith.constant 0 : i32
    %c0_i32_1 = arith.constant 0 : i32
    return %c0_i32, %c0_i32_0 : i32, i32
  }
  func.func @transform_4(%arg0: i32) -> (i32, i32, i32) {
    %c0_i32 = arith.constant 0 : i32
    %c0_i32_0 = arith.constant 0 : i32
    %c0_i32_1 = arith.constant 0 : i32
    return %arg0, %c0_i32, %c0_i32_0 : i32, i32, i32
  }
}

</mosaic_0001>

<llo_original>
// kernel: single_layer_forward.1
$region0: #{single_layer_forward.1}
  #allocation0 [shape = 'u32[]', space=smem, size = 0x4, offset = 0x4, fixed_abs, tag = 'smem constant byte address 0x4 - core index']
  #allocation1 [shape = 'u32[144,128]{1,0:T(1,128)}', space=vmem, size = 0x12000, scoped, tag = 'internal scratch']
  %s0 = inlined_call_operand.vmem [shape: f32[2,4,256], index: 0, kind: input, shape index: {}]
  %s1 = inlined_call_operand.vmem [shape: f32[4,2], index: 1, kind: input, shape index: {}]
  %s2 = inlined_call_operand.vmem [shape: f32[8,36], index: 2, kind: input, shape index: {}]
  %s3 = inlined_call_operand.vmem [shape: f32[9,256], index: 3, kind: input, shape index: {}]
  %s4 = inlined_call_operand.vmem [shape: f32[2,12,256], index: 4, kind: output, shape index: {}]
  %s5 = sld [smem:[#allocation0]]
  $region26: #{single_layer_forward.1} parent=0
    _
  %s7 = ssub.s32 1, %s5
  %s8 = scalar_select 0, %s7, %s5
  // Predicated region
  $region2: #{single_layer_forward.1} parent=0 // pred_check
    _
  $region3: #{single_layer_forward.1} parent=0 // pred_check_branch
    %10 = sbr.rel (0) target = $region5
  $region4: #{single_layer_forward.1} parent=0 // pred_region
    _
  $region5: #{single_layer_forward.1} parent=0 // pred_fallthru
    _
  // Predicated region
  $region6: #{single_layer_forward.1} parent=0 // pred_check
    _
  $region7: #{single_layer_forward.1} parent=0 // pred_check_branch
    %12 = sbr.rel (0) target = $region9
  $region8: #{single_layer_forward.1} parent=0 // pred_region
    _
  $region9: #{single_layer_forward.1} parent=0 // pred_fallthru
    _
  // Predicated region
  $region10: #{single_layer_forward.1} parent=0 // pred_check
    _
  $region11: #{single_layer_forward.1} parent=0 // pred_check_branch
    %14 = sbr.rel (0) target = $region13
  $region12: #{single_layer_forward.1} parent=0 // pred_region
    _
  $region13: #{single_layer_forward.1} parent=0 // pred_fallthru
    _
  // Predicated region
  $region14: #{single_layer_forward.1} parent=0 // pred_check
    _
  $region15: #{single_layer_forward.1} parent=0 // pred_check_branch
    %16 = sbr.rel (0) target = $region17
  $region16: #{single_layer_forward.1} parent=0 // pred_region
    _
  $region17: #{single_layer_forward.1} parent=0 // pred_fallthru
    _
  %v17 = vld [vmem:[%s1] sm:$0xf]
  %v18 = vld [vmem:[%s3] sm:$0xff]
  %v19 = vld [vmem:[%s3 + $0x8] sm:$0xff]
  %v20 = vld [vmem:[%s3 + $0x10] sm:$0x1]
  %v21 = vld [vmem:[%s3 + $0x18] sm:$0x1]
  %v22 = vld [vmem:[%s0] sm:$0xff]
  %24 = vset.pattern.permute.xlu0 0
  %25 = vperm.xlu0 %24, %v17
  %v26 = vpop.permute.xlu0 %25
  %v28 = vunpack.c.l.s4 839922192
  %v29 = vunpack.c.0.s8 %v28
  %v30 = vlaneseq
  %v31 = vshrl.u32 %v30, 7
  %v32 = vsub.s32 %v29, %v31
  %v33 = vrot.slane %v26, %v32
  %v35 = vmul.f32 %v22, %v33
  %36 = vset.pattern.permute.xlu0 1
  %37 = vperm.xlu0 %36, %v17
  %v38 = vpop.permute.xlu0 %37
  %v40 = vunpack.c.l.s4 839922192
  %v41 = vunpack.c.0.s8 %v40
  %v42 = vlaneseq
  %v43 = vshrl.u32 %v42, 7
  %v44 = vsub.s32 %v41, %v43
  %v45 = vrot.slane %v38, %v44
  %v47 = vadd.f32 %v35, %v45
  %v48 = vmax.f32 %v47, 0.0
  %v50 = vcombine.high %v48, %v48
  %52 = vrot.lane.b32.xlu0 %v48, 17
  %v53 = vpop.permute.xlu0 %52
  %54 = vrot.lane.b32.xlu0 %v50, 17
  %v55 = vpop.permute.xlu0 %54
  %v56 = vlaneseq
  %v57 = vand.u32 %v56, 127
  %vm58 = vcmp.lt.s32.totalorder %v57, 17
  %v59 = vsel %vm58, %v53, %v55
  %v60 = vsel %vm58, %v55, %v53
  %v61 = vlaneseq
  %v62 = vshrl.u32 %v61, 7
  %v63 = vsub.s32 0, %v62
  %v64 = vrot.slane %v18, %v63
  %v65 = vlaneseq
  %v66 = vshrl.u32 %v65, 7
  %v67 = vsub.s32 0, %v66
  %v68 = vrot.slane %v19, %v67
  %v69 = vmul.f32 %v60, %v64
  %v70 = vmul.f32 %v59, %v68
  %71 = vrot.lane.b32.xlu0 %v48, 16
  %v72 = vpop.permute.xlu0 %71
  %73 = vrot.lane.b32.xlu0 %v50, 16
  %v74 = vpop.permute.xlu0 %73
  %vm75 = vcmp.lt.s32.totalorder %v57, 16
  %v76 = vsel %vm75, %v72, %v74
  %v77 = vsel %vm75, %v74, %v72
  %v78 = vlaneseq
  %v79 = vshrl.u32 %v78, 7
  %v80 = vsub.s32 1, %v79
  %v81 = vrot.slane %v18, %v80
  %v82 = vlaneseq
  %v83 = vshrl.u32 %v82, 7
  %v84 = vsub.s32 1, %v83
  %v85 = vrot.slane %v19, %v84
  %v86 = vmul.f32 %v77, %v81
  %v87 = vmul.f32 %v76, %v85
  %88 = vrot.lane.b32.xlu0 %v48, 15
  %v89 = vpop.permute.xlu0 %88
  %90 = vrot.lane.b32.xlu0 %v50, 15
  %v91 = vpop.permute.xlu0 %90
  %vm92 = vcmp.lt.s32.totalorder %v57, 15
  %v93 = vsel %vm92, %v89, %v91
  %v94 = vsel %vm92, %v91, %v89
  %v95 = vlaneseq
  %v96 = vshrl.u32 %v95, 7
  %v97 = vsub.s32 2, %v96
  %v98 = vrot.slane %v18, %v97
  %v99 = vlaneseq
  %v100 = vshrl.u32 %v99, 7
  %v101 = vsub.s32 2, %v100
  %v102 = vrot.slane %v19, %v101
  %v103 = vmul.f32 %v94, %v98
  %v104 = vmul.f32 %v93, %v102
  %105 = vrot.lane.b32.xlu0 %v48, 1
  %v106 = vpop.permute.xlu0 %105
  %107 = vrot.lane.b32.xlu0 %v50, 1
  %v108 = vpop.permute.xlu0 %107
  %vm109 = vcmp.lt.s32.totalorder %v57, 1
  %v110 = vsel %vm109, %v106, %v108
  %v111 = vsel %vm109, %v108, %v106
  %v112 = vlaneseq
  %v113 = vshrl.u32 %v112, 7
  %v114 = vsub.s32 3, %v113
  %v115 = vrot.slane %v18, %v114
  %v116 = vlaneseq
  %v117 = vshrl.u32 %v116, 7
  %v118 = vsub.s32 3, %v117
  %v119 = vrot.slane %v19, %v118
  %v120 = vmul.f32 %v111, %v115
  %v121 = vmul.f32 %v110, %v119
  %v122 = vlaneseq
  %v123 = vshrl.u32 %v122, 7
  %v124 = vsub.s32 4, %v123
  %v125 = vrot.slane %v18, %v124
  %v126 = vlaneseq
  %v127 = vshrl.u32 %v126, 7
  %v128 = vsub.s32 4, %v127
  %v129 = vrot.slane %v19, %v128
  %v132 = vcombine.low %v125, %v129
  %v134 = vmul.f32 %v48, %v132
  %135 = vrot.lane.b32.xlu0 %v48, 127
  %v136 = vpop.permute.xlu0 %135
  %137 = vrot.lane.b32.xlu0 %v50, 127
  %v138 = vpop.permute.xlu0 %137
  %vm139 = vcmp.lt.s32.totalorder %v57, 127
  %v140 = vsel %vm139, %v136, %v138
  %v141 = vsel %vm139, %v138, %v136
  %v142 = vlaneseq
  %v143 = vshrl.u32 %v142, 7
  %v144 = vsub.s32 5, %v143
  %v145 = vrot.slane %v18, %v144
  %v146 = vlaneseq
  %v147 = vshrl.u32 %v146, 7
  %v148 = vsub.s32 5, %v147
  %v149 = vrot.slane %v19, %v148
  %v150 = vmul.f32 %v140, %v145
  %v151 = vmul.f32 %v141, %v149
  %152 = vrot.lane.b32.xlu0 %v48, 113
  %v153 = vpop.permute.xlu0 %152
  %154 = vrot.lane.b32.xlu0 %v50, 113
  %v155 = vpop.permute.xlu0 %154
  %vm156 = vcmp.lt.s32.totalorder %v57, 113
  %v157 = vsel %vm156, %v153, %v155
  %v158 = vsel %vm156, %v155, %v153
  %v159 = vlaneseq
  %v160 = vshrl.u32 %v159, 7
  %v161 = vsub.s32 6, %v160
  %v162 = vrot.slane %v18, %v161
  %v163 = vlaneseq
  %v164 = vshrl.u32 %v163, 7
  %v165 = vsub.s32 6, %v164
  %v166 = vrot.slane %v19, %v165
  %v167 = vmul.f32 %v157, %v162
  %v168 = vmul.f32 %v158, %v166
  %169 = vrot.lane.b32.xlu0 %v48, 112
  %v170 = vpop.permute.xlu0 %169
  %171 = vrot.lane.b32.xlu0 %v50, 112
  %v172 = vpop.permute.xlu0 %171
  %vm173 = vcmp.lt.s32.totalorder %v57, 112
  %v174 = vsel %vm173, %v170, %v172
  %v175 = vsel %vm173, %v172, %v170
  %v176 = vlaneseq
  %v177 = vshrl.u32 %v176, 7
  %v178 = vsub.s32 7, %v177
  %v179 = vrot.slane %v18, %v178
  %v180 = vlaneseq
  %v181 = vshrl.u32 %v180, 7
  %v182 = vsub.s32 7, %v181
  %v183 = vrot.slane %v19, %v182
  %v184 = vmul.f32 %v174, %v179
  %v185 = vmul.f32 %v175, %v183
  %186 = vrot.lane.b32.xlu0 %v48, 111
  %v187 = vpop.permute.xlu0 %186
  %188 = vrot.lane.b32.xlu0 %v50, 111
  %v189 = vpop.permute.xlu0 %188
  %vm190 = vcmp.lt.s32.totalorder %v57, 111
  %v191 = vsel %vm190, %v187, %v189
  %v192 = vsel %vm190, %v189, %v187
  %v193 = vlaneseq
  %v194 = vshrl.u32 %v193, 7
  %v195 = vsub.s32 0, %v194
  %v196 = vrot.slane %v20, %v195
  %v197 = vlaneseq
  %v198 = vshrl.u32 %v197, 7
  %v199 = vsub.s32 0, %v198
  %v200 = vrot.slane %v21, %v199
  %v201 = vmul.f32 %v191, %v196
  %v202 = vmul.f32 %v192, %v200
  %v205 = vrot.slane %v86, 4
  %v206 = vrot.slane %v87, 4
  %v211 = vrot.slane %v120, 4
  %v212 = vrot.slane %v121, 4
  %v216 = vcombine.high %v134, %v134
  %v220 = vrot.slane %v150, 4
  %v221 = vrot.slane %v151, 4
  %v226 = vrot.slane %v184, 4
  %v227 = vrot.slane %v185, 4
  %vm230 = vcmask 1043456
  %v231 = vsel %vm230, %v69, %v205
  %v232 = vsel %vm230, %v70, %v206
  %v233 = vsel %vm230, %v103, %v211
  %v234 = vsel %vm230, %v104, %v212
  %v235 = vsel %vm230, %v134, %v220
  %v236 = vsel %vm230, %v216, %v221
  %v237 = vsel %vm230, %v167, %v226
  %v238 = vsel %vm230, %v168, %v227
  %s239 = scalar_lea.vmem %s0, 8
  %v240 = vld [vmem:[%s239] sm:$0xff]
  %v241 = vmul.f32 %v240, %v33
  %v242 = vadd.f32 %v241, %v45
  %v243 = vmax.f32 %v242, 0.0
  %v245 = vcombine.high %v243, %v243
  %247 = vrot.lane.b32.xlu0 %v243, 17
  %v248 = vpop.permute.xlu0 %247
  %249 = vrot.lane.b32.xlu0 %v245, 17
  %v250 = vpop.permute.xlu0 %249
  %v251 = vsel %vm58, %v248, %v250
  %v252 = vsel %vm58, %v250, %v248
  %v253 = vmul.f32 %v252, %v64
  %v254 = vmul.f32 %v251, %v68
  %255 = vrot.lane.b32.xlu0 %v243, 16
  %v256 = vpop.permute.xlu0 %255
  %257 = vrot.lane.b32.xlu0 %v245, 16
  %v258 = vpop.permute.xlu0 %257
  %v259 = vsel %vm75, %v256, %v258
  %v260 = vsel %vm75, %v258, %v256
  %v261 = vmul.f32 %v260, %v81
  %v262 = vmul.f32 %v259, %v85
  %263 = vrot.lane.b32.xlu0 %v243, 15
  %v264 = vpop.permute.xlu0 %263
  %265 = vrot.lane.b32.xlu0 %v245, 15
  %v266 = vpop.permute.xlu0 %265
  %v267 = vsel %vm92, %v264, %v266
  %v268 = vsel %vm92, %v266, %v264
  %v269 = vmul.f32 %v268, %v98
  %v270 = vmul.f32 %v267, %v102
  %271 = vrot.lane.b32.xlu0 %v243, 1
  %v272 = vpop.permute.xlu0 %271
  %273 = vrot.lane.b32.xlu0 %v245, 1
  %v274 = vpop.permute.xlu0 %273
  %v275 = vsel %vm109, %v272, %v274
  %v276 = vsel %vm109, %v274, %v272
  %v277 = vmul.f32 %v276, %v115
  %v278 = vmul.f32 %v275, %v119
  %v279 = vmul.f32 %v243, %v132
  %280 = vrot.lane.b32.xlu0 %v243, 127
  %v281 = vpop.permute.xlu0 %280
  %282 = vrot.lane.b32.xlu0 %v245, 127
  %v283 = vpop.permute.xlu0 %282
  %v284 = vsel %vm139, %v281, %v283
  %v285 = vsel %vm139, %v283, %v281
  %v286 = vmul.f32 %v284, %v145
  %v287 = vmul.f32 %v285, %v149
  %288 = vrot.lane.b32.xlu0 %v243, 113
  %v289 = vpop.permute.xlu0 %288
  %290 = vrot.lane.b32.xlu0 %v245, 113
  %v291 = vpop.permute.xlu0 %290
  %v292 = vsel %vm156, %v289, %v291
  %v293 = vsel %vm156, %v291, %v289
  %v294 = vmul.f32 %v292, %v162
  %v295 = vmul.f32 %v293, %v166
  %296 = vrot.lane.b32.xlu0 %v243, 112
  %v297 = vpop.permute.xlu0 %296
  %298 = vrot.lane.b32.xlu0 %v245, 112
  %v299 = vpop.permute.xlu0 %298
  %v300 = vsel %vm173, %v297, %v299
  %v301 = vsel %vm173, %v299, %v297
  %v302 = vmul.f32 %v300, %v179
  %v303 = vmul.f32 %v301, %v183
  %304 = vrot.lane.b32.xlu0 %v243, 111
  %v305 = vpop.permute.xlu0 %304
  %306 = vrot.lane.b32.xlu0 %v245, 111
  %v307 = vpop.permute.xlu0 %306
  %v308 = vsel %vm190, %v305, %v307
  %v309 = vsel %vm190, %v307, %v305
  %v310 = vmul.f32 %v308, %v196
  %v311 = vmul.f32 %v309, %v200
  %v314 = vrot.slane %v261, 4
  %v315 = vrot.slane %v262, 4
  %v320 = vrot.slane %v277, 4
  %v321 = vrot.slane %v278, 4
  %v325 = vcombine.high %v279, %v279
  %v329 = vrot.slane %v286, 4
  %v330 = vrot.slane %v287, 4
  %v335 = vrot.slane %v302, 4
  %v336 = vrot.slane %v303, 4
  %v339 = vsel %vm230, %v253, %v314
  %v340 = vsel %vm230, %v254, %v315
  %v341 = vsel %vm230, %v269, %v320
  %v342 = vsel %vm230, %v270, %v321
  %v343 = vsel %vm230, %v279, %v329
  %v344 = vsel %vm230, %v325, %v330
  %v345 = vsel %vm230, %v294, %v335
  %v346 = vsel %vm230, %v295, %v336
  %v347 = vld [vmem:[%s2] sm:$0xff]
  %vm348 = vcmask 293888
  %v350 = vsel %vm348, %v347, 0
  %v353 = vsel %vm230, %v201, 0
  %v356 = vsel %vm230, %v202, 0
  %v359 = vsel %vm230, %v310, 0
  %v362 = vsel %vm230, %v311, 0
  %364 = vmatprep.subr.mxu0 %v232
  %365 = vmatpush1.msra.mxu0 %v231
  %366 = vmatprep.subr.mxu0 %v234
  %367 = vmatpush1.msra.mxu0 %v233
  %368 = vmatprep.subr.mxu0 %v236
  %369 = vmatpush1.msra.mxu0 %v235
  %370 = vmatprep.subr.mxu0 %v238
  %371 = vmatpush1.msra.mxu0 %v237
  %372 = vmatprep.subr.mxu0 %v356
  %373 = vmatpush1.msra.mxu0 %v353
  %374 = vmatprep.subr.mxu0 0.0
  %375 = vmatpush1.msra.mxu0 0.0
  %376 = vmatprep.subr.mxu0 0.0
  %377 = vmatpush1.msra.mxu0 0.0
  %378 = vmatprep.subr.mxu0 0.0
  %379 = vmatpush1.msra.mxu0 0.0
  %380 = vmatprep.subr.mxu0 0.0
  %381 = vmatpush1.msra.mxu0 0.0
  %382 = vmatprep.subr.mxu0 0.0
  %383 = vmatpush1.msra.mxu0 0.0
  %384 = vmatprep.subr.mxu0 0.0
  %385 = vmatpush1.msra.mxu0 0.0
  %386 = vmatprep.subr.mxu0 0.0
  %387 = vmatpush1.msra.mxu0 0.0
  %388 = vmatprep.subr.mxu0 0.0
  %389 = vmatpush1.msra.mxu0 0.0
  %390 = vmatprep.subr.mxu0 0.0
  %391 = vmatpush1.msra.mxu0 0.0
  %392 = vmatprep.subr.mxu0 0.0
  %393 = vmatpush1.msra.mxu0 0.0
  %394 = vmatprep.subr.mxu0 0.0
  %395 = vmatpush1.msra.mxu0 0.0
  %396 = vmatprep.subr.mxu0 0.0
  %397 = vmatpush1.msra.mxu0 0.0
  %398 = vmatprep.subr.mxu0 0.0
  %399 = vmatpush1.msra.mxu0 0.0
  %400 = vmatprep.subr.mxu0 0.0
  %401 = vmatpush1.msra.mxu0 0.0
  %402 = vmatprep.subr.mxu0 0.0
  %403 = vmatpush1.msra.mxu0 0.0
  %404 = vmatprep.subr.mxu0 0.0
  %405 = vmatpush1.msra.mxu0 0.0
  %406 = vmatprep.subr.mxu0 0.0
  %407 = vmatpush1.msra.mxu0 0.0
  %408 = vmatprep.subr.mxu0 0.0
  %409 = vmatpush1.msra.mxu0 0.0
  %410 = vmatprep.subr.mxu0 0.0
  %411 = vmatpush1.msra.mxu0 0.0
  %412 = vmatprep.subr.mxu0 0.0
  %413 = vmatpush1.msra.mxu0 0.0
  %414 = vmatprep.subr.mxu0 0.0
  %415 = vmatpush1.msra.mxu0 0.0
  %416 = vmatprep.subr.mxu0 0.0
  %417 = vmatpush1.msra.mxu0 0.0
  %418 = vmatprep.subr.mxu0 0.0
  %419 = vmatpush1.msra.mxu0 0.0
  %420 = vmatprep.subr.mxu0 0.0
  %421 = vmatpush1.msra.mxu0 0.0
  %422 = vmatprep.subr.mxu0 0.0
  %423 = vmatpush1.msra.mxu0 0.0
  %424 = vmatprep.subr.mxu0 0.0
  %425 = vmatpush1.msra.mxu0 0.0
  %426 = vmatprep.subr.mxu0 0.0
  %427 = vmatpush1.msra.mxu0 0.0
  %428 = vmatprep.mubr.f32.mxu0 0.0
  %429 = vmatmul.mubr.f32.gmra.mrb[0].mxu0 %v350
  %v430 = vpop.f32.mrb[0].mxu0
  %v431 = vadd.f32 0.0, %v430
  %v432 = vpop.f32.mrb[0].mxu0
  %v433 = vadd.f32 0.0, %v432
  %434 = vdwg.mxu0
  %435 = vmatprep.subr.mxu0 %v340
  %436 = vmatpush1.msra.mxu0 %v339
  %437 = vmatprep.subr.mxu0 %v342
  %438 = vmatpush1.msra.mxu0 %v341
  %439 = vmatprep.subr.mxu0 %v344
  %440 = vmatpush1.msra.mxu0 %v343
  %441 = vmatprep.subr.mxu0 %v346
  %442 = vmatpush1.msra.mxu0 %v345
  %443 = vmatprep.subr.mxu0 %v362
  %444 = vmatpush1.msra.mxu0 %v359
  %445 = vmatprep.subr.mxu0 0.0
  %446 = vmatpush1.msra.mxu0 0.0
  %447 = vmatprep.subr.mxu0 0.0
  %448 = vmatpush1.msra.mxu0 0.0
  %449 = vmatprep.subr.mxu0 0.0
  %450 = vmatpush1.msra.mxu0 0.0
  %451 = vmatprep.subr.mxu0 0.0
  %452 = vmatpush1.msra.mxu0 0.0
  %453 = vmatprep.subr.mxu0 0.0
  %454 = vmatpush1.msra.mxu0 0.0
  %455 = vmatprep.subr.mxu0 0.0
  %456 = vmatpush1.msra.mxu0 0.0
  %457 = vmatprep.subr.mxu0 0.0
  %458 = vmatpush1.msra.mxu0 0.0
  %459 = vmatprep.subr.mxu0 0.0
  %460 = vmatpush1.msra.mxu0 0.0
  %461 = vmatprep.subr.mxu0 0.0
  %462 = vmatpush1.msra.mxu0 0.0
  %463 = vmatprep.subr.mxu0 0.0
  %464 = vmatpush1.msra.mxu0 0.0
  %465 = vmatprep.subr.mxu0 0.0
  %466 = vmatpush1.msra.mxu0 0.0
  %467 = vmatprep.subr.mxu0 0.0
  %468 = vmatpush1.msra.mxu0 0.0
  %469 = vmatprep.subr.mxu0 0.0
  %470 = vmatpush1.msra.mxu0 0.0
  %471 = vmatprep.subr.mxu0 0.0
  %472 = vmatpush1.msra.mxu0 0.0
  %473 = vmatprep.subr.mxu0 0.0
  %474 = vmatpush1.msra.mxu0 0.0
  %475 = vmatprep.subr.mxu0 0.0
  %476 = vmatpush1.msra.mxu0 0.0
  %477 = vmatprep.subr.mxu0 0.0
  %478 = vmatpush1.msra.mxu0 0.0
  %479 = vmatprep.subr.mxu0 0.0
  %480 = vmatpush1.msra.mxu0 0.0
  %481 = vmatprep.subr.mxu0 0.0
  %482 = vmatpush1.msra.mxu0 0.0
  %483 = vmatprep.subr.mxu0 0.0
  %484 = vmatpush1.msra.mxu0 0.0
  %485 = vmatprep.subr.mxu0 0.0
  %486 = vmatpush1.msra.mxu0 0.0
  %487 = vmatprep.subr.mxu0 0.0
  %488 = vmatpush1.msra.mxu0 0.0
  %489 = vmatprep.subr.mxu0 0.0
  %490 = vmatpush1.msra.mxu0 0.0
  %491 = vmatprep.subr.mxu0 0.0
  %492 = vmatpush1.msra.mxu0 0.0
  %493 = vmatprep.subr.mxu0 0.0
  %494 = vmatpush1.msra.mxu0 0.0
  %495 = vmatprep.subr.mxu0 0.0
  %496 = vmatpush1.msra.mxu0 0.0
  %497 = vmatprep.subr.mxu0 0.0
  %498 = vmatpush1.msra.mxu0 0.0
  %499 = vmatprep.mubr.f32.mxu0 0.0
  %500 = vmatmul.mubr.f32.gmra.mrb[0].mxu0 %v350
  %v501 = vpop.f32.mrb[0].mxu0
  %v502 = vadd.f32 0.0, %v501
  %v503 = vpop.f32.mrb[0].mxu0
  %v504 = vadd.f32 0.0, %v503
  %505 = vdwg.mxu0
  %v507 = vcombine.high %v22, %v22
  %509 = vst [vmem:[%s4] sm:$0xf] %v22
  %510 = vst [vmem:[%s4 + $0x8] sm:$0xf] %v507
  %v513 = vrot.slane %v431, 4
  %v514 = vrot.slane %v433, 4
  %517 = vst [vmem:[%s4] sm:$0xf0] %v513
  %518 = vst [vmem:[%s4 + $0x8] sm:$0xf0] %v514
  %519 = vst [vmem:[%s4 + $0x10] sm:$0xf] %v513
  %520 = vst [vmem:[%s4 + $0x18] sm:$0xf] %v514
  %v522 = vcombine.high %v240, %v240
  %s524 = scalar_lea.vmem %s4, 32
  %525 = vst [vmem:[%s524] sm:$0xf] %v240
  %526 = vst [vmem:[%s524 + $0x8] sm:$0xf] %v522
  %v529 = vrot.slane %v502, 4
  %v530 = vrot.slane %v504, 4
  %533 = vst [vmem:[%s524] sm:$0xf0] %v529
  %534 = vst [vmem:[%s524 + $0x8] sm:$0xf0] %v530
  %535 = vst [vmem:[%s524 + $0x10] sm:$0xf] %v529
  %536 = vst [vmem:[%s524 + $0x18] sm:$0xf] %v530
  // Predicated region
  $region18: #{single_layer_forward.1} parent=0 // pred_check
    _
  $region19: #{single_layer_forward.1} parent=0 // pred_check_branch
    %538 = sbr.rel (0) target = $region21
  $region20: #{single_layer_forward.1} parent=0 // pred_region
    _
  $region21: #{single_layer_forward.1} parent=0 // pred_fallthru
    _
  // Predicated region
  $region22: #{single_layer_forward.1} parent=0 // pred_check
    _
  $region23: #{single_layer_forward.1} parent=0 // pred_check_branch
    %540 = sbr.rel (0) target = $region25
  $region24: #{single_layer_forward.1} parent=0 // pred_region
    _
  $region25: #{single_layer_forward.1} parent=0 // pred_fallthru
    _

</llo_original>
